<compile_context>
chip_gen: v7x
topology: tpu7x:2x2x1
jax: 0.10.0
libtpu: 0.0.40
codegen_flags: <defaults>
</compile_context>

<pallas_src>
import jax
import jax.numpy as jnp
from jax.experimental import pallas as pl
from jax.experimental.pallas import tpu as pltpu


def _round_up(x, m):
    return ((x + m - 1) // m) * m


def _mlp_kernel(x_ref, w1_ref, b1_ref, w2_ref, b2_ref, w3_ref, b3_ref, o_ref):
    # Layer 1: (TB,300) @ (300,10) + (1,10) -> sigmoid.  MXU accumulates in f32
    # regardless of the (f32 or bf16) input dtype.
    h1 = jnp.dot(x_ref[...], w1_ref[...], preferred_element_type=jnp.float32)
    h1 = jax.nn.sigmoid(h1 + b1_ref[...].astype(jnp.float32))
    # Layer 2: (TB,10) @ (10,10) + (1,10) -> sigmoid
    h2 = jnp.dot(h1, w2_ref[...], preferred_element_type=jnp.float32)
    h2 = jax.nn.sigmoid(h2 + b2_ref[...])
    # Layer 3: (TB,10) @ (10,4) + (1,4) -> direct (masked) store of real output
    out = jnp.dot(h2, w3_ref[...], preferred_element_type=jnp.float32)
    o_ref[...] = (out + b3_ref[...]).astype(o_ref.dtype)


def _pick_tile(B, tile_rows):
    """Row-tile size: big (amortize per-step overhead), 16-aligned when tiling,
    and clamped so the grid has >= 2 steps for B >= 32 (v7x megacore)."""
    tb = min(tile_rows, B)
    if tb < B:
        tb = max(16, (tb // 16) * 16)          # legal sublane alignment, f32 & bf16
    if B >= 32:
        tb = min(tb, _round_up(pl.cdiv(B, 2), 16))
    return tb


def net_forward(x, params, *, tile_rows=4096):
    """x: (B, 300). params: dict of transposed weights / (1, out) biases."""
    B, F = x.shape
    assert F == 300, "Net expects 300 input features"

    w1, b1 = params["w1"], params["b1"]
    w2, b2 = params["w2"], params["b2"]
    w3, b3 = params["w3"], params["b3"]
    n_out = w3.shape[1]

    # bf16 only if the producer already emits bf16 x (no standalone wrapper cast
    # of the dominant x stream). Casting the 300x10 w1 is negligible.
    w1_in = w1.astype(jnp.bfloat16) if x.dtype == jnp.bfloat16 else w1

    tb = _pick_tile(B, tile_rows)
    grid = (pl.cdiv(B, tb),)   # ragged last block handled by Pallas (output masked)

    # Whole-array, grid-constant block (stays VMEM-resident across grid steps).
    def const_spec(a):
        return pl.BlockSpec(a.shape, lambda i: (0,) * a.ndim,
                            memory_space=pltpu.VMEM)

    flops = 2 * B * (300 * 10 + 10 * 10 + 10 * n_out)
    transcendentals = 20 * B  # two 10-wide sigmoids per row
    param_bytes = sum(int(a.size) * a.dtype.itemsize
                      for a in (w1_in, b1, w2, b2, w3, b3))
    bytes_accessed = (int(x.size) * x.dtype.itemsize
                      + B * n_out * 4 + param_bytes)

    return pl.pallas_call(
        _mlp_kernel,
        out_shape=jax.ShapeDtypeStruct((B, n_out), jnp.float32),
        grid=grid,
        in_specs=[
            pl.BlockSpec((tb, 300), lambda i: (i, 0), memory_space=pltpu.VMEM),
            const_spec(w1_in), const_spec(b1),
            const_spec(w2), const_spec(b2),
            const_spec(w3), const_spec(b3),
        ],
        out_specs=pl.BlockSpec((tb, n_out), lambda i: (i, 0),
                               memory_space=pltpu.VMEM),
        compiler_params=pltpu.CompilerParams(
            dimension_semantics=("parallel",),   # shards across v7x's 2 TCs
            vmem_limit_bytes=32 * 1024 * 1024,   # ~17 MiB used at tb=4096 f32
        ),
        cost_estimate=pl.CostEstimate(
            flops=flops,
            transcendentals=transcendentals,
            bytes_accessed=bytes_accessed,
        ),
    )(x, w1_in, b1, w2, b2, w3, b3)


def init_params(key):
    """Deterministic init matching torch.nn.Linear shapes (weights transposed)."""
    ks = jax.random.split(key, 6)

    def linear(kw, kb, fan_in, fan_out):
        bound = 1.0 / jnp.sqrt(fan_in)
        w = jax.random.uniform(kw, (fan_in, fan_out), jnp.float32, -bound, bound)
        b = jax.random.uniform(kb, (1, fan_out), jnp.float32, -bound, bound)
        return w, b

    w1, b1 = linear(ks[0], ks[1], 300, 10)
    w2, b2 = linear(ks[2], ks[3], 10, 10)
    w3, b3 = linear(ks[4], ks[5], 10, 4)
    return {"w1": w1, "b1": b1, "w2": w2, "b2": b2, "w3": w3, "b3": b3}


def reference_forward(x, p):
    xf = x.astype(jnp.float32)
    h1 = jax.nn.sigmoid(xf @ p["w1"] + p["b1"])
    h2 = jax.nn.sigmoid(h1 @ p["w2"] + p["b2"])
    return h2 @ p["w3"] + p["b3"]


if __name__ == "__main__":
    key = jax.random.PRNGKey(0)
    k_x, k_x2, k_p = jax.random.split(key, 3)
    params = init_params(k_p)

    # Small-batch check (single grid step, block == full array), f32 path.
    B = 8
    x = jax.random.normal(k_x, (B, 300), jnp.float32)
    out = jax.block_until_ready(net_forward(x, params))
    ref = reference_forward(x, params)
    assert out.shape == (B, 4)
    assert jnp.allclose(out, ref, atol=1e-5, rtol=1e-5), "f32 mismatch vs reference"

    # Multi-step grid with ragged last block (grid=(3,), no wrapper jnp.pad).
    B2 = 40
    x2 = jax.random.normal(k_x2, (B2, 300), jnp.float32)
    out2 = jax.block_until_ready(net_forward(x2, params, tile_rows=16))
    ref2 = reference_forward(x2, params)
    assert out2.shape == (B2, 4)
    assert jnp.allclose(out2, ref2, atol=1e-5, rtol=1e-5), "grid mismatch vs reference"

    # Opt-in bf16 path: only engages when x already arrives as bf16 upstream.
    x2_bf16 = x2.astype(jnp.bfloat16)
    out_bf16 = jax.block_until_ready(net_forward(x2_bf16, params, tile_rows=16))
    assert jnp.allclose(out_bf16, reference_forward(x2_bf16, params),
                        atol=2e-2, rtol=2e-2), "bf16 mismatch"

    print("KERNEL_OK")
</pallas_src>

<mosaic_0001>
module attributes {stable_mosaic.version = 11 : i64} {
  func.func @_mlp_kernel(%arg0: i32, %arg1: memref<8x300xf32, #tpu.memory_space<vmem>>, %arg2: memref<300x10xf32, #tpu.memory_space<vmem>>, %arg3: memref<1x10xf32, #tpu.memory_space<vmem>>, %arg4: memref<10x10xf32, #tpu.memory_space<vmem>>, %arg5: memref<1x10xf32, #tpu.memory_space<vmem>>, %arg6: memref<10x4xf32, #tpu.memory_space<vmem>>, %arg7: memref<1x4xf32, #tpu.memory_space<vmem>>, %arg8: memref<8x4xf32, #tpu.memory_space<vmem>>) attributes {dimension_semantics = [#tpu.dimension_semantics<parallel>], iteration_bounds = array<i64: 1>, scalar_prefetch = 0 : i64, scratch_operands = 0 : i64, tpu.core_type = #tpu.core_type<tc>, window_params = [{transform_indices = @transform_0, window_bounds = array<i64: 8, 300>}, {pipeline_mode = #tpu.pipeline_mode<synchronous>, transform_indices = @transform_1, window_bounds = array<i64: 300, 10>}, {pipeline_mode = #tpu.pipeline_mode<synchronous>, transform_indices = @transform_2, window_bounds = array<i64: 1, 10>}, {pipeline_mode = #tpu.pipeline_mode<synchronous>, transform_indices = @transform_3, window_bounds = array<i64: 10, 10>}, {pipeline_mode = #tpu.pipeline_mode<synchronous>, transform_indices = @transform_4, window_bounds = array<i64: 1, 10>}, {pipeline_mode = #tpu.pipeline_mode<synchronous>, transform_indices = @transform_5, window_bounds = array<i64: 10, 4>}, {pipeline_mode = #tpu.pipeline_mode<synchronous>, transform_indices = @transform_6, window_bounds = array<i64: 1, 4>}, {transform_indices = @transform_7, window_bounds = array<i64: 8, 4>}]} {
    %c0 = arith.constant 0 : index
    %c0_0 = arith.constant 0 : index
    %0 = vector.load %arg1[%c0, %c0_0] : memref<8x300xf32, #tpu.memory_space<vmem>>, vector<8x300xf32>
    %c0_1 = arith.constant 0 : index
    %c0_2 = arith.constant 0 : index
    %1 = vector.load %arg2[%c0_1, %c0_2] : memref<300x10xf32, #tpu.memory_space<vmem>>, vector<300x10xf32>
    %cst = arith.constant dense<0.000000e+00> : vector<8x10xf32>
    %2 = tpu.matmul %0, %1, %cst {dimension_numbers = #tpu.dot_dimension_numbers<[1], [0], [0], [1], [0, 0, 1, 1], [], []>} : vector<8x300xf32>, vector<300x10xf32>, vector<8x10xf32> -> vector<8x10xf32>
    %c0_3 = arith.constant 0 : index
    %c0_4 = arith.constant 0 : index
    %3 = vector.load %arg3[%c0_3, %c0_4] : memref<1x10xf32, #tpu.memory_space<vmem>>, vector<1x10xf32>
    %4 = vector.broadcast %3 : vector<1x10xf32> to vector<8x10xf32>
    %5 = arith.addf %2, %4 : vector<8x10xf32>
    %6 = arith.negf %5 : vector<8x10xf32>
    %7 = math.exp %6 : vector<8x10xf32>
    %cst_5 = arith.constant 1.000000e+00 : f32
    %8 = vector.broadcast %cst_5 : f32 to vector<8x10xf32>
    %9 = arith.addf %8, %7 : vector<8x10xf32>
    %10 = arith.divf %8, %9 : vector<8x10xf32>
    %c0_6 = arith.constant 0 : index
    %c0_7 = arith.constant 0 : index
    %11 = vector.load %arg4[%c0_6, %c0_7] : memref<10x10xf32, #tpu.memory_space<vmem>>, vector<10x10xf32>
    %cst_8 = arith.constant dense<0.000000e+00> : vector<8x10xf32>
    %12 = tpu.matmul %10, %11, %cst_8 {dimension_numbers = #tpu.dot_dimension_numbers<[1], [0], [0], [1], [0, 0, 1, 1], [], []>} : vector<8x10xf32>, vector<10x10xf32>, vector<8x10xf32> -> vector<8x10xf32>
    %c0_9 = arith.constant 0 : index
    %c0_10 = arith.constant 0 : index
    %13 = vector.load %arg5[%c0_9, %c0_10] : memref<1x10xf32, #tpu.memory_space<vmem>>, vector<1x10xf32>
    %14 = vector.broadcast %13 : vector<1x10xf32> to vector<8x10xf32>
    %15 = arith.addf %12, %14 : vector<8x10xf32>
    %16 = arith.negf %15 : vector<8x10xf32>
    %17 = math.exp %16 : vector<8x10xf32>
    %cst_11 = arith.constant 1.000000e+00 : f32
    %18 = vector.broadcast %cst_11 : f32 to vector<8x10xf32>
    %19 = arith.addf %18, %17 : vector<8x10xf32>
    %20 = arith.divf %18, %19 : vector<8x10xf32>
    %c0_12 = arith.constant 0 : index
    %c0_13 = arith.constant 0 : index
    %21 = vector.load %arg6[%c0_12, %c0_13] : memref<10x4xf32, #tpu.memory_space<vmem>>, vector<10x4xf32>
    %cst_14 = arith.constant dense<0.000000e+00> : vector<8x4xf32>
    %22 = tpu.matmul %20, %21, %cst_14 {dimension_numbers = #tpu.dot_dimension_numbers<[1], [0], [0], [1], [0, 0, 1, 1], [], []>} : vector<8x10xf32>, vector<10x4xf32>, vector<8x4xf32> -> vector<8x4xf32>
    %c0_15 = arith.constant 0 : index
    %c0_16 = arith.constant 0 : index
    %23 = vector.load %arg7[%c0_15, %c0_16] : memref<1x4xf32, #tpu.memory_space<vmem>>, vector<1x4xf32>
    %24 = vector.broadcast %23 : vector<1x4xf32> to vector<8x4xf32>
    %25 = arith.addf %22, %24 : vector<8x4xf32>
    %c0_17 = arith.constant 0 : index
    %c0_18 = arith.constant 0 : index
    %26 = vector.load %arg8[%c0_17, %c0_18] : memref<8x4xf32, #tpu.memory_space<vmem>>, vector<8x4xf32>
    tpu.vector_store %arg8[%c0_17, %c0_18], %25 {strides = array<i32>} : memref<8x4xf32, #tpu.memory_space<vmem>>, vector<8x4xf32>,
    return
  }
  func.func @transform_0(%arg0: i32) -> (i32, i32) {
    %c0_i32 = arith.constant 0 : i32
    %c0_i32_0 = arith.constant 0 : i32
    return %arg0, %c0_i32 : i32, i32
  }
  func.func @transform_1(%arg0: i32) -> (i32, i32) {
    %c0_i32 = arith.constant 0 : i32
    %c0_i32_0 = arith.constant 0 : i32
    %c0_i32_1 = arith.constant 0 : i32
    return %c0_i32, %c0_i32_0 : i32, i32
  }
  func.func @transform_2(%arg0: i32) -> (i32, i32) {
    %c0_i32 = arith.constant 0 : i32
    %c0_i32_0 = arith.constant 0 : i32
    %c0_i32_1 = arith.constant 0 : i32
    return %c0_i32, %c0_i32_0 : i32, i32
  }
  func.func @transform_3(%arg0: i32) -> (i32, i32) {
    %c0_i32 = arith.constant 0 : i32
    %c0_i32_0 = arith.constant 0 : i32
    %c0_i32_1 = arith.constant 0 : i32
    return %c0_i32, %c0_i32_0 : i32, i32
  }
  func.func @transform_4(%arg0: i32) -> (i32, i32) {
    %c0_i32 = arith.constant 0 : i32
    %c0_i32_0 = arith.constant 0 : i32
    %c0_i32_1 = arith.constant 0 : i32
    return %c0_i32, %c0_i32_0 : i32, i32
  }
  func.func @transform_5(%arg0: i32) -> (i32, i32) {
    %c0_i32 = arith.constant 0 : i32
    %c0_i32_0 = arith.constant 0 : i32
    %c0_i32_1 = arith.constant 0 : i32
    return %c0_i32, %c0_i32_0 : i32, i32
  }
  func.func @transform_6(%arg0: i32) -> (i32, i32) {
    %c0_i32 = arith.constant 0 : i32
    %c0_i32_0 = arith.constant 0 : i32
    %c0_i32_1 = arith.constant 0 : i32
    return %c0_i32, %c0_i32_0 : i32, i32
  }
  func.func @transform_7(%arg0: i32) -> (i32, i32) {
    %c0_i32 = arith.constant 0 : i32
    %c0_i32_0 = arith.constant 0 : i32
    return %arg0, %c0_i32 : i32, i32
  }
}

</mosaic_0001>

<llo_original>
// kernel: tpu_custom_call.1
$region0: #{tpu_custom_call.1}
  #allocation0 [shape = 'u32[]', space=smem, size = 0x4, offset = 0x4, fixed_abs, tag = 'smem constant byte address 0x4 - core index']
  #allocation1 [shape = 'u32[144,128]{1,0:T(1,128)}', space=vmem, size = 0x12000, scoped, tag = 'internal scratch']
  %s0 = inlined_call_operand.vmem [shape: f32[8,300], index: 0, kind: input, shape index: {}]
  %s1 = inlined_call_operand.vmem [shape: f32[300,10], index: 1, kind: input, shape index: {}]
  %s2 = inlined_call_operand.vmem [shape: f32[1,10], index: 2, kind: input, shape index: {}]
  %s3 = inlined_call_operand.vmem [shape: f32[10,10], index: 3, kind: input, shape index: {}]
  %s4 = inlined_call_operand.vmem [shape: f32[1,10], index: 4, kind: input, shape index: {}]
  %s5 = inlined_call_operand.vmem [shape: f32[10,4], index: 5, kind: input, shape index: {}]
  %s6 = inlined_call_operand.vmem [shape: f32[1,4], index: 6, kind: input, shape index: {}]
  %s7 = inlined_call_operand.vmem [shape: f32[8,4], index: 7, kind: output, shape index: {}]
  %s8 = sld [smem:[#allocation0]]
  $region38: #{tpu_custom_call.1} parent=0
    _
  %s10 = ssub.s32 1, %s8
  %s11 = scalar_select 0, %s10, %s8
  // Predicated region
  $region2: #{tpu_custom_call.1} parent=0 // pred_check
    _
  $region3: #{tpu_custom_call.1} parent=0 // pred_check_branch
    %13 = sbr.rel (0) target = $region5
  $region4: #{tpu_custom_call.1} parent=0 // pred_region
    _
  $region5: #{tpu_custom_call.1} parent=0 // pred_fallthru
    _
  // Predicated region
  $region6: #{tpu_custom_call.1} parent=0 // pred_check
    _
  $region7: #{tpu_custom_call.1} parent=0 // pred_check_branch
    %15 = sbr.rel (0) target = $region9
  $region8: #{tpu_custom_call.1} parent=0 // pred_region
    _
  $region9: #{tpu_custom_call.1} parent=0 // pred_fallthru
    _
  // Predicated region
  $region10: #{tpu_custom_call.1} parent=0 // pred_check
    _
  $region11: #{tpu_custom_call.1} parent=0 // pred_check_branch
    %17 = sbr.rel (0) target = $region13
  $region12: #{tpu_custom_call.1} parent=0 // pred_region
    _
  $region13: #{tpu_custom_call.1} parent=0 // pred_fallthru
    _
  // Predicated region
  $region14: #{tpu_custom_call.1} parent=0 // pred_check
    _
  $region15: #{tpu_custom_call.1} parent=0 // pred_check_branch
    %19 = sbr.rel (0) target = $region17
  $region16: #{tpu_custom_call.1} parent=0 // pred_region
    _
  $region17: #{tpu_custom_call.1} parent=0 // pred_fallthru
    _
  // Predicated region
  $region18: #{tpu_custom_call.1} parent=0 // pred_check
    _
  $region19: #{tpu_custom_call.1} parent=0 // pred_check_branch
    %21 = sbr.rel (0) target = $region21
  $region20: #{tpu_custom_call.1} parent=0 // pred_region
    _
  $region21: #{tpu_custom_call.1} parent=0 // pred_fallthru
    _
  // Predicated region
  $region22: #{tpu_custom_call.1} parent=0 // pred_check
    _
  $region23: #{tpu_custom_call.1} parent=0 // pred_check_branch
    %23 = sbr.rel (0) target = $region25
  $region24: #{tpu_custom_call.1} parent=0 // pred_region
    _
  $region25: #{tpu_custom_call.1} parent=0 // pred_fallthru
    _
  // Predicated region
  $region26: #{tpu_custom_call.1} parent=0 // pred_check
    _
  $region27: #{tpu_custom_call.1} parent=0 // pred_check_branch
    %25 = sbr.rel (0) target = $region29
  $region28: #{tpu_custom_call.1} parent=0 // pred_region
    _
  $region29: #{tpu_custom_call.1} parent=0 // pred_fallthru
    _
  %v26 = vld [vmem:[%s0] sm:$0xff]
  %v27 = vld [vmem:[%s0 + $0x8] sm:$0xff]
  %v28 = vld [vmem:[%s0 + $0x10] sm:$0xff]
  %v29 = vld [vmem:[%s1] sm:$0xff]
  %v30 = vld [vmem:[%s1 + $0x8] sm:$0xff]
  %v31 = vld [vmem:[%s1 + $0x10] sm:$0xff]
  %v32 = vld [vmem:[%s1 + $0x18] sm:$0xff]
  %v33 = vld [vmem:[%s1 + $0x20] sm:$0xff]
  %v34 = vld [vmem:[%s1 + $0x28] sm:$0xff]
  %v35 = vld [vmem:[%s1 + $0x30] sm:$0xff]
  %v36 = vld [vmem:[%s1 + $0x38] sm:$0xff]
  %v37 = vld [vmem:[%s1 + $0x40] sm:$0xff]
  %v38 = vld [vmem:[%s1 + $0x48] sm:$0xff]
  %v39 = vld [vmem:[%s1 + $0x50] sm:$0xff]
  %v40 = vld [vmem:[%s1 + $0x58] sm:$0xff]
  %v41 = vld [vmem:[%s1 + $0x60] sm:$0xff]
  %v42 = vld [vmem:[%s1 + $0x68] sm:$0xff]
  %v43 = vld [vmem:[%s1 + $0x70] sm:$0xff]
  %v44 = vld [vmem:[%s1 + $0x78] sm:$0xff]
  %v45 = vld [vmem:[%s1 + $0x80] sm:$0xff]
  %v46 = vld [vmem:[%s1 + $0x88] sm:$0xff]
  %v47 = vld [vmem:[%s1 + $0x90] sm:$0xff]
  %v48 = vld [vmem:[%s1 + $0x98] sm:$0xff]
  %v49 = vld [vmem:[%s1 + $0xa0] sm:$0xff]
  %v50 = vld [vmem:[%s1 + $0xa8] sm:$0xff]
  %v51 = vld [vmem:[%s1 + $0xb0] sm:$0xff]
  %v52 = vld [vmem:[%s1 + $0xb8] sm:$0xff]
  %v53 = vld [vmem:[%s1 + $0xc0] sm:$0xff]
  %v54 = vld [vmem:[%s1 + $0xc8] sm:$0xff]
  %v55 = vld [vmem:[%s1 + $0xd0] sm:$0xff]
  %v56 = vld [vmem:[%s1 + $0xd8] sm:$0xff]
  %v57 = vld [vmem:[%s1 + $0xe0] sm:$0xff]
  %v58 = vld [vmem:[%s1 + $0xe8] sm:$0xff]
  %v59 = vld [vmem:[%s1 + $0xf0] sm:$0xff]
  %v60 = vld [vmem:[%s1 + $0xf8] sm:$0xff]
  %v61 = vld [vmem:[%s1 + $0x100] sm:$0xff]
  %v62 = vld [vmem:[%s1 + $0x108] sm:$0xff]
  %v63 = vld [vmem:[%s1 + $0x110] sm:$0xff]
  %v64 = vld [vmem:[%s1 + $0x118] sm:$0xff]
  %v65 = vld [vmem:[%s1 + $0x120] sm:$0xff]
  %v66 = vld [vmem:[%s1 + $0x128] sm:$0xf]
  %v67 = vld [vmem:[%s2] sm:$0x1]
  %v69 = vlaneseq
  %v70 = vshrl.u32 %v69, 7
  %v71 = vsub.s32 0, %v70
  %v72 = vrot.slane %v67, %v71
  %vm74 = vcmask 359424
  %v76 = vsel %vm74, %v28, 0
  %vm78 = vcmask 1043456
  %v80 = vsel %vm78, %v66, 0
  %82 = vmatprep.subr.mxu0 0.0
  %83 = vmatpush1.msra.mxu0 %v29
  %84 = vmatprep.subr.mxu0 0.0
  %85 = vmatpush1.msra.mxu0 %v30
  %86 = vmatprep.subr.mxu0 0.0
  %87 = vmatpush1.msra.mxu0 %v31
  %88 = vmatprep.subr.mxu0 0.0
  %89 = vmatpush1.msra.mxu0 %v32
  %90 = vmatprep.subr.mxu0 0.0
  %91 = vmatpush1.msra.mxu0 %v33
  %92 = vmatprep.subr.mxu0 0.0
  %93 = vmatpush1.msra.mxu0 %v34
  %94 = vmatprep.subr.mxu0 0.0
  %95 = vmatpush1.msra.mxu0 %v35
  %96 = vmatprep.subr.mxu0 0.0
  %97 = vmatpush1.msra.mxu0 %v36
  %98 = vmatprep.subr.mxu0 0.0
  %99 = vmatpush1.msra.mxu0 %v37
  %100 = vmatprep.subr.mxu0 0.0
  %101 = vmatpush1.msra.mxu0 %v38
  %102 = vmatprep.subr.mxu0 0.0
  %103 = vmatpush1.msra.mxu0 %v39
  %104 = vmatprep.subr.mxu0 0.0
  %105 = vmatpush1.msra.mxu0 %v40
  %106 = vmatprep.subr.mxu0 0.0
  %107 = vmatpush1.msra.mxu0 %v41
  %108 = vmatprep.subr.mxu0 0.0
  %109 = vmatpush1.msra.mxu0 %v42
  %110 = vmatprep.subr.mxu0 0.0
  %111 = vmatpush1.msra.mxu0 %v43
  %112 = vmatprep.subr.mxu0 0.0
  %113 = vmatpush1.msra.mxu0 %v44
  %114 = vmatprep.subr.mxu0 0.0
  %115 = vmatpush1.msra.mxu0 %v45
  %116 = vmatprep.subr.mxu0 0.0
  %117 = vmatpush1.msra.mxu0 %v46
  %118 = vmatprep.subr.mxu0 0.0
  %119 = vmatpush1.msra.mxu0 %v47
  %120 = vmatprep.subr.mxu0 0.0
  %121 = vmatpush1.msra.mxu0 %v48
  %122 = vmatprep.subr.mxu0 0.0
  %123 = vmatpush1.msra.mxu0 %v49
  %124 = vmatprep.subr.mxu0 0.0
  %125 = vmatpush1.msra.mxu0 %v50
  %126 = vmatprep.subr.mxu0 0.0
  %127 = vmatpush1.msra.mxu0 %v51
  %128 = vmatprep.subr.mxu0 0.0
  %129 = vmatpush1.msra.mxu0 %v52
  %130 = vmatprep.subr.mxu0 0.0
  %131 = vmatpush1.msra.mxu0 %v53
  %132 = vmatprep.subr.mxu0 0.0
  %133 = vmatpush1.msra.mxu0 %v54
  %134 = vmatprep.subr.mxu0 0.0
  %135 = vmatpush1.msra.mxu0 %v55
  %136 = vmatprep.subr.mxu0 0.0
  %137 = vmatpush1.msra.mxu0 %v56
  %138 = vmatprep.subr.mxu0 0.0
  %139 = vmatpush1.msra.mxu0 %v57
  %140 = vmatprep.subr.mxu0 0.0
  %141 = vmatpush1.msra.mxu0 %v58
  %142 = vmatprep.subr.mxu0 0.0
  %143 = vmatpush1.msra.mxu0 %v59
  %144 = vmatprep.subr.mxu0 0.0
  %145 = vmatpush1.msra.mxu0 %v60
  %146 = vmatprep.mubr.f32.mxu0 %v27
  %147 = vmatmul.mubr.f32.gmra.mrb[0].mxu0 %v26
  %v148 = vpop.f32.mrb[0].mxu0
  %v149 = vadd.f32 %v72, %v148
  %v150 = vpop.f32.mrb[0].mxu0
  %151 = vdwg.mxu0
  %152 = vmatprep.subr.mxu0 0.0
  %153 = vmatpush1.msra.mxu0 %v61
  %154 = vmatprep.subr.mxu0 0.0
  %155 = vmatpush1.msra.mxu0 %v62
  %156 = vmatprep.subr.mxu0 0.0
  %157 = vmatpush1.msra.mxu0 %v63
  %158 = vmatprep.subr.mxu0 0.0
  %159 = vmatpush1.msra.mxu0 %v64
  %160 = vmatprep.subr.mxu0 0.0
  %161 = vmatpush1.msra.mxu0 %v65
  %162 = vmatprep.subr.mxu0 0.0
  %163 = vmatpush1.msra.mxu0 %v80
  %164 = vmatprep.subr.mxu0 0.0
  %165 = vmatpush1.msra.mxu0 0.0
  %166 = vmatprep.subr.mxu0 0.0
  %167 = vmatpush1.msra.mxu0 0.0
  %168 = vmatprep.subr.mxu0 0.0
  %169 = vmatpush1.msra.mxu0 0.0
  %170 = vmatprep.subr.mxu0 0.0
  %171 = vmatpush1.msra.mxu0 0.0
  %172 = vmatprep.subr.mxu0 0.0
  %173 = vmatpush1.msra.mxu0 0.0
  %174 = vmatprep.subr.mxu0 0.0
  %175 = vmatpush1.msra.mxu0 0.0
  %176 = vmatprep.subr.mxu0 0.0
  %177 = vmatpush1.msra.mxu0 0.0
  %178 = vmatprep.subr.mxu0 0.0
  %179 = vmatpush1.msra.mxu0 0.0
  %180 = vmatprep.subr.mxu0 0.0
  %181 = vmatpush1.msra.mxu0 0.0
  %182 = vmatprep.subr.mxu0 0.0
  %183 = vmatpush1.msra.mxu0 0.0
  %184 = vmatprep.subr.mxu0 0.0
  %185 = vmatpush1.msra.mxu0 0.0
  %186 = vmatprep.subr.mxu0 0.0
  %187 = vmatpush1.msra.mxu0 0.0
  %188 = vmatprep.subr.mxu0 0.0
  %189 = vmatpush1.msra.mxu0 0.0
  %190 = vmatprep.subr.mxu0 0.0
  %191 = vmatpush1.msra.mxu0 0.0
  %192 = vmatprep.subr.mxu0 0.0
  %193 = vmatpush1.msra.mxu0 0.0
  %194 = vmatprep.subr.mxu0 0.0
  %195 = vmatpush1.msra.mxu0 0.0
  %196 = vmatprep.subr.mxu0 0.0
  %197 = vmatpush1.msra.mxu0 0.0
  %198 = vmatprep.subr.mxu0 0.0
  %199 = vmatpush1.msra.mxu0 0.0
  %200 = vmatprep.subr.mxu0 0.0
  %201 = vmatpush1.msra.mxu0 0.0
  %202 = vmatprep.subr.mxu0 0.0
  %203 = vmatpush1.msra.mxu0 0.0
  %204 = vmatprep.subr.mxu0 0.0
  %205 = vmatpush1.msra.mxu0 0.0
  %206 = vmatprep.subr.mxu0 0.0
  %207 = vmatpush1.msra.mxu0 0.0
  %208 = vmatprep.subr.mxu0 0.0
  %209 = vmatpush1.msra.mxu0 0.0
  %210 = vmatprep.subr.mxu0 0.0
  %211 = vmatpush1.msra.mxu0 0.0
  %212 = vmatprep.subr.mxu0 0.0
  %213 = vmatpush1.msra.mxu0 0.0
  %214 = vmatprep.subr.mxu0 0.0
  %215 = vmatpush1.msra.mxu0 0.0
  %216 = vmatprep.mubr.f32.mxu0 0.0
  %217 = vmatmul.mubr.f32.gmra.mrb[0].mxu0 %v76
  %v218 = vpop.f32.mrb[0].mxu0
  %v219 = vadd.f32 %v149, %v218
  %v220 = vpop.f32.mrb[0].mxu0
  %221 = vdwg.mxu0
  %v222 = vxor.u32 %v219, 2147483648
  %v223 = vmul.f32 %v222, 1.442695
  %v224 = vpow.pop %v223
  %v225 = vadd.f32 %v224, 1.0
  %v226 = vrcp.pop %v225
  %v227 = vmul.f32 1.0, %v226
  %v228 = vld [vmem:[%s3] sm:$0xff]
  %v229 = vld [vmem:[%s3 + $0x8] sm:$0x3]
  %v230 = vld [vmem:[%s4] sm:$0x1]
  %v232 = vlaneseq
  %v233 = vshrl.u32 %v232, 7
  %v234 = vsub.s32 0, %v233
  %v235 = vrot.slane %v230, %v234
  %vm237 = vcmask 80896
  %v239 = vsel %vm237, %v227, 0
  %vm241 = vcmask 1041408
  %v243 = vsel %vm241, %v229, 0
  %245 = vmatprep.subr.mxu0 0.0
  %246 = vmatpush1.msra.mxu0 %v228
  %247 = vmatprep.subr.mxu0 0.0
  %248 = vmatpush1.msra.mxu0 %v243
  %249 = vmatprep.subr.mxu0 0.0
  %250 = vmatpush1.msra.mxu0 0.0
  %251 = vmatprep.subr.mxu0 0.0
  %252 = vmatpush1.msra.mxu0 0.0
  %253 = vmatprep.subr.mxu0 0.0
  %254 = vmatpush1.msra.mxu0 0.0
  %255 = vmatprep.subr.mxu0 0.0
  %256 = vmatpush1.msra.mxu0 0.0
  %257 = vmatprep.subr.mxu0 0.0
  %258 = vmatpush1.msra.mxu0 0.0
  %259 = vmatprep.subr.mxu0 0.0
  %260 = vmatpush1.msra.mxu0 0.0
  %261 = vmatprep.subr.mxu0 0.0
  %262 = vmatpush1.msra.mxu0 0.0
  %263 = vmatprep.subr.mxu0 0.0
  %264 = vmatpush1.msra.mxu0 0.0
  %265 = vmatprep.subr.mxu0 0.0
  %266 = vmatpush1.msra.mxu0 0.0
  %267 = vmatprep.subr.mxu0 0.0
  %268 = vmatpush1.msra.mxu0 0.0
  %269 = vmatprep.subr.mxu0 0.0
  %270 = vmatpush1.msra.mxu0 0.0
  %271 = vmatprep.subr.mxu0 0.0
  %272 = vmatpush1.msra.mxu0 0.0
  %273 = vmatprep.subr.mxu0 0.0
  %274 = vmatpush1.msra.mxu0 0.0
  %275 = vmatprep.subr.mxu0 0.0
  %276 = vmatpush1.msra.mxu0 0.0
  %277 = vmatprep.subr.mxu0 0.0
  %278 = vmatpush1.msra.mxu0 0.0
  %279 = vmatprep.subr.mxu0 0.0
  %280 = vmatpush1.msra.mxu0 0.0
  %281 = vmatprep.subr.mxu0 0.0
  %282 = vmatpush1.msra.mxu0 0.0
  %283 = vmatprep.subr.mxu0 0.0
  %284 = vmatpush1.msra.mxu0 0.0
  %285 = vmatprep.subr.mxu0 0.0
  %286 = vmatpush1.msra.mxu0 0.0
  %287 = vmatprep.subr.mxu0 0.0
  %288 = vmatpush1.msra.mxu0 0.0
  %289 = vmatprep.subr.mxu0 0.0
  %290 = vmatpush1.msra.mxu0 0.0
  %291 = vmatprep.subr.mxu0 0.0
  %292 = vmatpush1.msra.mxu0 0.0
  %293 = vmatprep.subr.mxu0 0.0
  %294 = vmatpush1.msra.mxu0 0.0
  %295 = vmatprep.subr.mxu0 0.0
  %296 = vmatpush1.msra.mxu0 0.0
  %297 = vmatprep.subr.mxu0 0.0
  %298 = vmatpush1.msra.mxu0 0.0
  %299 = vmatprep.subr.mxu0 0.0
  %300 = vmatpush1.msra.mxu0 0.0
  %301 = vmatprep.subr.mxu0 0.0
  %302 = vmatpush1.msra.mxu0 0.0
  %303 = vmatprep.subr.mxu0 0.0
  %304 = vmatpush1.msra.mxu0 0.0
  %305 = vmatprep.subr.mxu0 0.0
  %306 = vmatpush1.msra.mxu0 0.0
  %307 = vmatprep.subr.mxu0 0.0
  %308 = vmatpush1.msra.mxu0 0.0
  %309 = vmatprep.mubr.f32.mxu0 0.0
  %310 = vmatmul.mubr.f32.gmra.mrb[0].mxu0 %v239
  %v311 = vpop.f32.mrb[0].mxu0
  %v312 = vadd.f32 %v235, %v311
  %v313 = vpop.f32.mrb[0].mxu0
  %314 = vdwg.mxu0
  %v315 = vxor.u32 %v312, 2147483648
  %v316 = vmul.f32 %v315, 1.442695
  %v317 = vpow.pop %v316
  %v318 = vadd.f32 %v317, 1.0
  %v319 = vrcp.pop %v318
  %v320 = vmul.f32 1.0, %v319
  %v321 = vld [vmem:[%s5] sm:$0xff]
  %v322 = vld [vmem:[%s5 + $0x8] sm:$0x3]
  %v323 = vld [vmem:[%s6] sm:$0x1]
  %v325 = vlaneseq
  %v326 = vshrl.u32 %v325, 7
  %v327 = vsub.s32 0, %v326
  %v328 = vrot.slane %v323, %v327
  %v331 = vsel %vm237, %v320, 0
  %v334 = vsel %vm241, %v322, 0
  %336 = vmatprep.subr.mxu0 0.0
  %337 = vmatpush1.msra.mxu0 %v321
  %338 = vmatprep.subr.mxu0 0.0
  %339 = vmatpush1.msra.mxu0 %v334
  %340 = vmatprep.subr.mxu0 0.0
  %341 = vmatpush1.msra.mxu0 0.0
  %342 = vmatprep.subr.mxu0 0.0
  %343 = vmatpush1.msra.mxu0 0.0
  %344 = vmatprep.subr.mxu0 0.0
  %345 = vmatpush1.msra.mxu0 0.0
  %346 = vmatprep.subr.mxu0 0.0
  %347 = vmatpush1.msra.mxu0 0.0
  %348 = vmatprep.subr.mxu0 0.0
  %349 = vmatpush1.msra.mxu0 0.0
  %350 = vmatprep.subr.mxu0 0.0
  %351 = vmatpush1.msra.mxu0 0.0
  %352 = vmatprep.subr.mxu0 0.0
  %353 = vmatpush1.msra.mxu0 0.0
  %354 = vmatprep.subr.mxu0 0.0
  %355 = vmatpush1.msra.mxu0 0.0
  %356 = vmatprep.subr.mxu0 0.0
  %357 = vmatpush1.msra.mxu0 0.0
  %358 = vmatprep.subr.mxu0 0.0
  %359 = vmatpush1.msra.mxu0 0.0
  %360 = vmatprep.subr.mxu0 0.0
  %361 = vmatpush1.msra.mxu0 0.0
  %362 = vmatprep.subr.mxu0 0.0
  %363 = vmatpush1.msra.mxu0 0.0
  %364 = vmatprep.subr.mxu0 0.0
  %365 = vmatpush1.msra.mxu0 0.0
  %366 = vmatprep.subr.mxu0 0.0
  %367 = vmatpush1.msra.mxu0 0.0
  %368 = vmatprep.subr.mxu0 0.0
  %369 = vmatpush1.msra.mxu0 0.0
  %370 = vmatprep.subr.mxu0 0.0
  %371 = vmatpush1.msra.mxu0 0.0
  %372 = vmatprep.subr.mxu0 0.0
  %373 = vmatpush1.msra.mxu0 0.0
  %374 = vmatprep.subr.mxu0 0.0
  %375 = vmatpush1.msra.mxu0 0.0
  %376 = vmatprep.subr.mxu0 0.0
  %377 = vmatpush1.msra.mxu0 0.0
  %378 = vmatprep.subr.mxu0 0.0
  %379 = vmatpush1.msra.mxu0 0.0
  %380 = vmatprep.subr.mxu0 0.0
  %381 = vmatpush1.msra.mxu0 0.0
  %382 = vmatprep.subr.mxu0 0.0
  %383 = vmatpush1.msra.mxu0 0.0
  %384 = vmatprep.subr.mxu0 0.0
  %385 = vmatpush1.msra.mxu0 0.0
  %386 = vmatprep.subr.mxu0 0.0
  %387 = vmatpush1.msra.mxu0 0.0
  %388 = vmatprep.subr.mxu0 0.0
  %389 = vmatpush1.msra.mxu0 0.0
  %390 = vmatprep.subr.mxu0 0.0
  %391 = vmatpush1.msra.mxu0 0.0
  %392 = vmatprep.subr.mxu0 0.0
  %393 = vmatpush1.msra.mxu0 0.0
  %394 = vmatprep.subr.mxu0 0.0
  %395 = vmatpush1.msra.mxu0 0.0
  %396 = vmatprep.subr.mxu0 0.0
  %397 = vmatpush1.msra.mxu0 0.0
  %398 = vmatprep.subr.mxu0 0.0
  %399 = vmatpush1.msra.mxu0 0.0
  %400 = vmatprep.mubr.f32.mxu0 0.0
  %401 = vmatmul.mubr.f32.gmra.mrb[0].mxu0 %v331
  %v402 = vpop.f32.mrb[0].mxu0
  %v403 = vadd.f32 %v328, %v402
  %v404 = vpop.f32.mrb[0].mxu0
  %405 = vdwg.mxu0
  %vm406 = vcmask 31744
  %407 = vst.msk [vmem:[%s7] sm:$0xff] %vm406, %v403
  // Predicated region
  $region30: #{tpu_custom_call.1} parent=0 // pred_check
    _
  $region31: #{tpu_custom_call.1} parent=0 // pred_check_branch
    %409 = sbr.rel (0) target = $region33
  $region32: #{tpu_custom_call.1} parent=0 // pred_region
    _
  $region33: #{tpu_custom_call.1} parent=0 // pred_fallthru
    _
  // Predicated region
  $region34: #{tpu_custom_call.1} parent=0 // pred_check
    _
  $region35: #{tpu_custom_call.1} parent=0 // pred_check_branch
    %411 = sbr.rel (0) target = $region37
  $region36: #{tpu_custom_call.1} parent=0 // pred_region
    _
  $region37: #{tpu_custom_call.1} parent=0 // pred_fallthru
    _

</llo_original>
